<compile_context>
chip_gen: v6e
topology: v6e:2x2x1
jax: 0.10.0
libtpu: 0.0.40
codegen_flags: <defaults>
</compile_context>

<pallas_src>
import jax
import jax.numpy as jnp
import numpy as np
from jax.experimental import pallas as pl
from jax.experimental.pallas import tpu as pltpu


# ------------------------------ helpers ------------------------------------ #

def _round_up(x, m):
    return ((x + m - 1) // m) * m


# ----------------------------- Pallas kernels ------------------------------ #

def _make_conv_bn_kernel(use_res, use_relu):
    """Fused (im2col-matmul) conv + BN bias (+ residual) (+ ReLU) kernel.

    Patches / weights arrive in bf16; accumulation + epilogue in f32.
    """
    if use_res:
        def kernel(p_ref, w_ref, b_ref, r_ref, o_ref):
            y = jnp.dot(p_ref[...], w_ref[...],
                        preferred_element_type=jnp.float32)
            y = y + b_ref[...] + r_ref[...]
            if use_relu:
                y = jnp.maximum(y, 0.0)
            o_ref[...] = y
    else:
        def kernel(p_ref, w_ref, b_ref, o_ref):
            y = jnp.dot(p_ref[...], w_ref[...],
                        preferred_element_type=jnp.float32)
            y = y + b_ref[...]
            if use_relu:
                y = jnp.maximum(y, 0.0)
            o_ref[...] = y
    return kernel


def conv_bn_pallas(patches, w_mat, scale, bias, res=None, relu=True, tm=512):
    """patches: (M, K) f32, w_mat: (K, Cout) f32, scale/bias: (Cout,) f32,
    res: optional (M, Cout) f32.  Returns (M, Cout) f32."""
    M, K = patches.shape
    Cout = w_mat.shape[1]

    # Fold the BN scale into the weight matrix (prep-time work in inference).
    w_f = w_mat.astype(jnp.float32) * scale.reshape(1, Cout).astype(jnp.float32)

    # Lane-dense output: pad Cout to a multiple of 128 (zero weights/bias/res
    # on the padded lanes -> padded output lanes are exactly 0 and sliced off).
    Coutp = _round_up(Cout, 128)

    # M tiling: multiple of 8, capped at `tm` rows, padded M divides evenly.
    TM = min(tm, _round_up(M, 8))
    Mp = _round_up(M, TM)
    grid_m = Mp // TM

    # Host-side padding + bf16 cast of the MXU operands.
    p_pad = jnp.pad(patches.astype(jnp.float32), ((0, Mp - M), (0, 0)))
    p_bf16 = p_pad.astype(jnp.bfloat16)
    w_bf16 = jnp.pad(w_f, ((0, 0), (0, Coutp - Cout))).astype(jnp.bfloat16)
    b_pad = jnp.pad(bias.reshape(1, Cout).astype(jnp.float32),
                    ((0, 0), (0, Coutp - Cout)))

    inputs = [p_bf16, w_bf16, b_pad]
    in_specs = [
        pl.BlockSpec((TM, K), lambda i: (i, 0)),
        pl.BlockSpec((K, Coutp), lambda i: (0, 0)),
        pl.BlockSpec((1, Coutp), lambda i: (0, 0)),
    ]
    if res is not None:
        r_pad = jnp.pad(res.astype(jnp.float32),
                        ((0, Mp - M), (0, Coutp - Cout)))
        inputs.append(r_pad)
        in_specs.append(pl.BlockSpec((TM, Coutp), lambda i: (i, 0)))

    # VMEM budget (double-buffered tiles) -> explicit scoped-VMEM limit that is
    # safe on v7x (64 MiB physical) and generous on v5e/v6e.
    vmem_need = (2 * TM * K * 2          # bf16 patch tile, double buffered
                 + 2 * K * Coutp * 2     # bf16 weights (pinned)
                 + 2 * 1 * Coutp * 4     # bias
                 + 2 * TM * Coutp * 4)   # f32 output tile
    if res is not None:
        vmem_need += 2 * TM * Coutp * 4  # f32 residual tile
    vmem_limit = int(min(max(4 * vmem_need, 16 * 1024 * 1024),
                         64 * 1024 * 1024))

    bytes_accessed = (Mp * K * 2 + K * Coutp * 2 + Coutp * 4
                      + Mp * Coutp * 4
                      + (Mp * Coutp * 4 if res is not None else 0))
    cost = pl.CostEstimate(flops=2 * Mp * K * Coutp,
                           transcendentals=0,
                           bytes_accessed=bytes_accessed)

    kernel = _make_conv_bn_kernel(res is not None, relu)
    out = pl.pallas_call(
        kernel,
        out_shape=jax.ShapeDtypeStruct((Mp, Coutp), jnp.float32),
        grid=(grid_m,),
        in_specs=in_specs,
        out_specs=pl.BlockSpec((TM, Coutp), lambda i: (i, 0)),
        compiler_params=pltpu.CompilerParams(
            dimension_semantics=("parallel",),
            vmem_limit_bytes=vmem_limit),
        cost_estimate=cost,
    )(*inputs)
    return out[:M, :Cout]


# ------------------------------ JAX glue ----------------------------------- #

def im2col(x_nhwc, kh, kw, stride, pad):
    """Extract conv patches. Returns ((N*Ho*Wo, kh*kw*C), Ho, Wo)."""
    xp = jnp.pad(x_nhwc, ((0, 0), (pad, pad), (pad, pad), (0, 0)))
    N, Hp, Wp, C = xp.shape
    Ho = (Hp - kh) // stride + 1
    Wo = (Wp - kw) // stride + 1
    cols = []
    for ky in range(kh):
        for kx in range(kw):
            cols.append(xp[:, ky:ky + stride * (Ho - 1) + 1:stride,
                           kx:kx + stride * (Wo - 1) + 1:stride, :])
    patches = jnp.stack(cols, axis=3)  # (N, Ho, Wo, kh*kw, C)
    return patches.reshape(N * Ho * Wo, kh * kw * C), Ho, Wo


def weight_to_matrix(w):
    """PyTorch conv weight (Cout, Cin, KH, KW) -> (KH*KW*Cin, Cout), im2col order."""
    Cout, Cin, KH, KW = w.shape
    return jnp.transpose(w, (2, 3, 1, 0)).reshape(KH * KW * Cin, Cout)


def bn_fold(gamma, beta, mean, var, eps=1e-5):
    scale = gamma / jnp.sqrt(var + eps)
    bias = beta - mean * scale
    return scale, bias


def basic_block_forward(x_nchw, params, stride):
    """Pallas implementation of BasicBlock.forward. Input/output NCHW."""
    x = jnp.transpose(x_nchw, (0, 2, 3, 1)).astype(jnp.float32)  # -> NHWC
    N, H, W, Cin = x.shape
    planes = params["w1"].shape[0]

    # --- shortcut branch ---
    if stride != 1 or Cin != planes:
        ps, Ho, Wo = im2col(x, 1, 1, stride, 0)
        ws = weight_to_matrix(params["ws"])
        ss, bs = bn_fold(*params["bns"])
        short = conv_bn_pallas(ps, ws, ss, bs, relu=False)  # (N*Ho*Wo, planes)
    else:
        Ho, Wo = H, W
        short = x.reshape(N * H * W, Cin)

    # --- conv1 + bn1 + relu ---
    p1, Ho, Wo = im2col(x, 3, 3, stride, 1)
    w1 = weight_to_matrix(params["w1"])
    s1, b1 = bn_fold(*params["bn1"])
    out1 = conv_bn_pallas(p1, w1, s1, b1, relu=True)
    out1_img = out1.reshape(N, Ho, Wo, planes)

    # --- conv2 + bn2 + residual add + relu (fused) ---
    p2, _, _ = im2col(out1_img, 3, 3, 1, 1)
    w2 = weight_to_matrix(params["w2"])
    s2, b2 = bn_fold(*params["bn2"])
    out2 = conv_bn_pallas(p2, w2, s2, b2, res=short, relu=True)

    out = out2.reshape(N, Ho, Wo, planes)
    return jnp.transpose(out, (0, 3, 1, 2))  # -> NCHW


# --------------------------- reference (verification) ---------------------- #

def ref_forward(x_nchw, params, stride, eps=1e-5):
    def conv(x, w, s, pad):
        return jax.lax.conv_general_dilated(
            x, w, (s, s), ((pad, pad), (pad, pad)),
            dimension_numbers=("NCHW", "OIHW", "NCHW"))

    def bn(x, g, b, m, v):
        g, b, m, v = (t[None, :, None, None] for t in (g, b, m, v))
        return (x - m) / jnp.sqrt(v + eps) * g + b

    out = jax.nn.relu(bn(conv(x_nchw, params["w1"], stride, 1), *params["bn1"]))
    out = bn(conv(out, params["w2"], 1, 1), *params["bn2"])
    if stride != 1 or x_nchw.shape[1] != params["w1"].shape[0]:
        sc = bn(conv(x_nchw, params["ws"], stride, 0), *params["bns"])
    else:
        sc = x_nchw
    return jax.nn.relu(out + sc)


# ----------------------------------- main ----------------------------------- #

if __name__ == "__main__":
    key = jax.random.PRNGKey(0)
    N, in_planes, planes, H, W, stride = 2, 4, 8, 16, 16, 2  # shortcut path exercised

    ks = jax.random.split(key, 16)

    def bn_params(k):
        k1, k2, k3, k4 = jax.random.split(k, 4)
        gamma = jax.random.uniform(k1, (planes,), jnp.float32, 0.5, 1.5)
        beta = jax.random.normal(k2, (planes,), jnp.float32) * 0.1
        mean = jax.random.normal(k3, (planes,), jnp.float32) * 0.1
        var = jax.random.uniform(k4, (planes,), jnp.float32, 0.5, 1.5)
        return (gamma, beta, mean, var)

    params = {
        "w1": jax.random.normal(ks[0], (planes, in_planes, 3, 3), jnp.float32) * 0.1,
        "bn1": bn_params(ks[1]),
        "w2": jax.random.normal(ks[2], (planes, planes, 3, 3), jnp.float32) * 0.1,
        "bn2": bn_params(ks[3]),
        "ws": jax.random.normal(ks[4], (planes, in_planes, 1, 1), jnp.float32) * 0.1,
        "bns": bn_params(ks[5]),
    }

    x = jax.random.normal(ks[6], (N, in_planes, H, W), jnp.float32)

    out = basic_block_forward(x, params, stride)
    out = jax.block_until_ready(out)

    ref = jax.block_until_ready(ref_forward(x, params, stride))
    # bf16 MXU inputs (f32 accumulation) -> loosen tolerance vs f32 reference.
    np.testing.assert_allclose(np.asarray(out), np.asarray(ref),
                               rtol=5e-2, atol=5e-2)

    print("KERNEL_OK")
</pallas_src>

<mosaic_0001>
module attributes {stable_mosaic.version = 11 : i64} {
  func.func @kernel(%arg0: i32, %arg1: memref<128x4xbf16, #tpu.memory_space<vmem>>, %arg2: memref<4x128xbf16, #tpu.memory_space<vmem>>, %arg3: memref<1x128xf32, #tpu.memory_space<vmem>>, %arg4: memref<128x128xf32, #tpu.memory_space<vmem>>) attributes {dimension_semantics = [#tpu.dimension_semantics<parallel>], iteration_bounds = array<i64: 1>, scalar_prefetch = 0 : i64, scratch_operands = 0 : i64, tpu.core_type = #tpu.core_type<tc>, window_params = [{transform_indices = @transform_0, window_bounds = array<i64: 128, 4>}, {pipeline_mode = #tpu.pipeline_mode<synchronous>, transform_indices = @transform_1, window_bounds = array<i64: 4, 128>}, {pipeline_mode = #tpu.pipeline_mode<synchronous>, transform_indices = @transform_2, window_bounds = array<i64: 1, 128>}, {transform_indices = @transform_3, window_bounds = array<i64: 128, 128>}]} {
    %c0 = arith.constant 0 : index
    %c0_0 = arith.constant 0 : index
    %0 = vector.load %arg1[%c0, %c0_0] : memref<128x4xbf16, #tpu.memory_space<vmem>>, vector<128x4xbf16>
    %c0_1 = arith.constant 0 : index
    %c0_2 = arith.constant 0 : index
    %1 = vector.load %arg2[%c0_1, %c0_2] : memref<4x128xbf16, #tpu.memory_space<vmem>>, vector<4x128xbf16>
    %cst = arith.constant dense<0.000000e+00> : vector<128x128xf32>
    %2 = tpu.matmul %0, %1, %cst {dimension_numbers = #tpu.dot_dimension_numbers<[1], [0], [0], [1], [0, 0, 1, 1], [], []>} : vector<128x4xbf16>, vector<4x128xbf16>, vector<128x128xf32> -> vector<128x128xf32>
    %c0_3 = arith.constant 0 : index
    %c0_4 = arith.constant 0 : index
    %3 = vector.load %arg3[%c0_3, %c0_4] : memref<1x128xf32, #tpu.memory_space<vmem>>, vector<1x128xf32>
    %4 = vector.broadcast %3 : vector<1x128xf32> to vector<128x128xf32>
    %5 = arith.addf %2, %4 : vector<128x128xf32>
    %c0_5 = arith.constant 0 : index
    %c0_6 = arith.constant 0 : index
    %6 = vector.load %arg4[%c0_5, %c0_6] : memref<128x128xf32, #tpu.memory_space<vmem>>, vector<128x128xf32>
    tpu.vector_store %arg4[%c0_5, %c0_6], %5 {strides = array<i32>} : memref<128x128xf32, #tpu.memory_space<vmem>>, vector<128x128xf32>,
    return
  }
  func.func @transform_0(%arg0: i32) -> (i32, i32) {
    %c0_i32 = arith.constant 0 : i32
    %c0_i32_0 = arith.constant 0 : i32
    return %arg0, %c0_i32 : i32, i32
  }
  func.func @transform_1(%arg0: i32) -> (i32, i32) {
    %c0_i32 = arith.constant 0 : i32
    %c0_i32_0 = arith.constant 0 : i32
    %c0_i32_1 = arith.constant 0 : i32
    return %c0_i32, %c0_i32_0 : i32, i32
  }
  func.func @transform_2(%arg0: i32) -> (i32, i32) {
    %c0_i32 = arith.constant 0 : i32
    %c0_i32_0 = arith.constant 0 : i32
    %c0_i32_1 = arith.constant 0 : i32
    return %c0_i32, %c0_i32_0 : i32, i32
  }
  func.func @transform_3(%arg0: i32) -> (i32, i32) {
    %c0_i32 = arith.constant 0 : i32
    %c0_i32_0 = arith.constant 0 : i32
    return %arg0, %c0_i32 : i32, i32
  }
}

</mosaic_0001>

<llo_original>
// kernel: tpu_custom_call.1
$region0: #{tpu_custom_call.1}
  #allocation0 [shape = 'u32[]', space=smem, size = 0x4, offset = 0x4, fixed_abs, tag = 'smem constant byte address 0x4 - core index']
  #allocation1 [shape = 'u32[144,128]{1,0:T(1,128)}', space=vmem, size = 0x12000, scoped, tag = 'internal scratch']
  %s0 = inlined_call_operand.vmem [shape: bf16[128,4], index: 0, kind: input, shape index: {}]
  %s1 = inlined_call_operand.vmem [shape: bf16[4,128], index: 1, kind: input, shape index: {}]
  %s2 = inlined_call_operand.vmem [shape: f32[1,128], index: 2, kind: input, shape index: {}]
  %s3 = inlined_call_operand.hbm [shape: f32[128,128], index: 3, kind: output, shape index: {}]
  %s4 = sld [smem:[#allocation0]]
  $region22: #{tpu_custom_call.1} parent=0
    _
  %s6 = ssub.s32 1, %s4
  %s7 = scalar_select 0, %s6, %s4
  $region1: #{tpu_custom_call.1} parent=0
    #allocation2 [shape = 'u8[65536]{0}', space=vmem, size = 0x10000, scoped, tag = 'output window, operand 0, single buffered']
    #allocation3 [shape = 's32[1]{0}', space=sflag, size = 0x4, scoped, tag = 'scoped memory for tpu_custom_call.1']
    %8 = vsyncpa [#allocation3], 0
    // Predicated region
    $region2: #{tpu_custom_call.1} parent=1 // pred_check
      _
    $region3: #{tpu_custom_call.1} parent=1 // pred_check_branch
      %10 = sbr.rel (0) target = $region5
    $region4: #{tpu_custom_call.1} parent=1 // pred_region
      _
    $region5: #{tpu_custom_call.1} parent=1 // pred_fallthru
      _
    // Predicated region
    $region6: #{tpu_custom_call.1} parent=1 // pred_check
      _
    $region7: #{tpu_custom_call.1} parent=1 // pred_check_branch
      %12 = sbr.rel (0) target = $region9
    $region8: #{tpu_custom_call.1} parent=1 // pred_region
      _
    $region9: #{tpu_custom_call.1} parent=1 // pred_fallthru
      _
    // Predicated region
    $region10: #{tpu_custom_call.1} parent=1 // pred_check
      _
    $region11: #{tpu_custom_call.1} parent=1 // pred_check_branch
      %14 = sbr.rel (0) target = $region13
    $region12: #{tpu_custom_call.1} parent=1 // pred_region
      _
    $region13: #{tpu_custom_call.1} parent=1 // pred_fallthru
      _
    %v16 = vld [vmem:[%s0] sm:$0xf]
    %v17 = vld [vmem:[%s0 + $0x4] sm:$0xf]
    %v18 = vld [vmem:[%s0 + $0x8] sm:$0xf]
    %v19 = vld [vmem:[%s0 + $0xc] sm:$0xf]
    %v20 = vld [vmem:[%s0 + $0x10] sm:$0xf]
    %v21 = vld [vmem:[%s0 + $0x14] sm:$0xf]
    %v22 = vld [vmem:[%s0 + $0x18] sm:$0xf]
    %v23 = vld [vmem:[%s0 + $0x1c] sm:$0xf]
    %v24 = vld [vmem:[%s0 + $0x20] sm:$0xf]
    %v25 = vld [vmem:[%s0 + $0x24] sm:$0xf]
    %v26 = vld [vmem:[%s0 + $0x28] sm:$0xf]
    %v27 = vld [vmem:[%s0 + $0x2c] sm:$0xf]
    %v28 = vld [vmem:[%s0 + $0x30] sm:$0xf]
    %v29 = vld [vmem:[%s0 + $0x34] sm:$0xf]
    %v30 = vld [vmem:[%s0 + $0x38] sm:$0xf]
    %v31 = vld [vmem:[%s0 + $0x3c] sm:$0xf]
    %v32 = vld [vmem:[%s1] sm:$0x3]
    %v33 = vld [vmem:[%s2] sm:$0x1]
    %v35 = vlaneseq
    %v36 = vshrl.u32 %v35, 7
    %v37 = vsub.s32 0, %v36
    %v38 = vrot.slane %v33, %v37
    %v56 = vunpack.c.l.b16 %v16
    %v57 = vunpack.c.l.b16 %v17
    %v58 = vunpack.c.l.b16 %v18
    %v59 = vunpack.c.l.b16 %v19
    %v60 = vunpack.c.l.b16 %v20
    %v61 = vunpack.c.l.b16 %v21
    %v62 = vunpack.c.l.b16 %v22
    %v63 = vunpack.c.l.b16 %v23
    %v64 = vunpack.c.l.b16 %v24
    %v65 = vunpack.c.l.b16 %v25
    %v66 = vunpack.c.l.b16 %v26
    %v67 = vunpack.c.l.b16 %v27
    %v68 = vunpack.c.l.b16 %v28
    %v69 = vunpack.c.l.b16 %v29
    %v70 = vunpack.c.l.b16 %v30
    %v71 = vunpack.c.l.b16 %v31
    %v72 = vpack.c.b16 %v57, %v56
    %v73 = vpack.c.b16 %v59, %v58
    %v74 = vpack.c.b16 %v61, %v60
    %v75 = vpack.c.b16 %v63, %v62
    %v76 = vpack.c.b16 %v65, %v64
    %v77 = vpack.c.b16 %v67, %v66
    %v78 = vpack.c.b16 %v69, %v68
    %v79 = vpack.c.b16 %v71, %v70
    %vm80 = vcmask 31744
    %v82 = vsel %vm80, %v72, 0
    %v85 = vsel %vm80, %v73, 0
    %v88 = vsel %vm80, %v74, 0
    %v91 = vsel %vm80, %v75, 0
    %v94 = vsel %vm80, %v76, 0
    %v97 = vsel %vm80, %v77, 0
    %v100 = vsel %vm80, %v78, 0
    %v103 = vsel %vm80, %v79, 0
    %vm105 = vcmask 1041408
    %v107 = vsel %vm105, %v32, 0
    %109 = vmatprep.subr.bf16.mxu0 0
    %110 = vmatpush1.bf16.msra.mxu0 0
    %111 = vmatprep.subr.bf16.mxu0 0
    %112 = vmatpush1.bf16.msra.mxu0 0
    %113 = vmatprep.subr.bf16.mxu0 0
    %114 = vmatpush1.bf16.msra.mxu0 0
    %115 = vmatprep.subr.bf16.mxu0 0
    %116 = vmatpush1.bf16.msra.mxu0 0
    %117 = vmatprep.subr.bf16.mxu0 0
    %118 = vmatpush1.bf16.msra.mxu0 0
    %119 = vmatprep.subr.bf16.mxu0 0
    %120 = vmatpush1.bf16.msra.mxu0 0
    %121 = vmatprep.subr.bf16.mxu0 0
    %122 = vmatpush1.bf16.msra.mxu0 0
    %123 = vmatprep.subr.bf16.mxu0 0
    %124 = vmatpush1.bf16.msra.mxu0 %v107
    %125 = vmatprep.subr.bf16.mxu0 0
    %126 = vmatpush2.bf16.msra.mxu0 0
    %127 = vmatprep.subr.bf16.mxu0 0
    %128 = vmatpush2.bf16.msra.mxu0 0
    %129 = vmatprep.subr.bf16.mxu0 0
    %130 = vmatpush2.bf16.msra.mxu0 0
    %131 = vmatprep.subr.bf16.mxu0 0
    %132 = vmatpush2.bf16.msra.mxu0 0
    %133 = vmatprep.subr.bf16.mxu0 0
    %134 = vmatpush2.bf16.msra.mxu0 0
    %135 = vmatprep.subr.bf16.mxu0 0
    %136 = vmatpush2.bf16.msra.mxu0 0
    %137 = vmatprep.subr.bf16.mxu0 0
    %138 = vmatpush2.bf16.msra.mxu0 0
    %139 = vmatprep.subr.bf16.mxu0 0
    %140 = vmatpush2.bf16.msra.mxu0 0
    %141 = vmatprep.mubr.bf16.mxu0 0
    %142 = vmatmul.mubr.bf16.gmra.mxu0 %v82
    %v143 = vpop.f32.mrf.mxu0
    %v144 = vadd.f32 %v38, %v143
    %v145 = vpop.f32.mrf.mxu0
    %v146 = vpop.f32.mrf.mxu0
    %v147 = vadd.f32 %v38, %v146
    %v148 = vpop.f32.mrf.mxu0
    %149 = vmatprep.mubr.bf16.mxu0 0
    %150 = vmatmul.mubr.bf16.gmra.mxu0 %v85
    %v151 = vpop.f32.mrf.mxu0
    %v152 = vadd.f32 %v38, %v151
    %v153 = vpop.f32.mrf.mxu0
    %v154 = vpop.f32.mrf.mxu0
    %v155 = vadd.f32 %v38, %v154
    %v156 = vpop.f32.mrf.mxu0
    %157 = vmatprep.mubr.bf16.mxu0 0
    %158 = vmatmul.mubr.bf16.gmra.mxu0 %v88
    %v159 = vpop.f32.mrf.mxu0
    %v160 = vadd.f32 %v38, %v159
    %v161 = vpop.f32.mrf.mxu0
    %v162 = vpop.f32.mrf.mxu0
    %v163 = vadd.f32 %v38, %v162
    %v164 = vpop.f32.mrf.mxu0
    %165 = vmatprep.mubr.bf16.mxu0 0
    %166 = vmatmul.mubr.bf16.gmra.mxu0 %v91
    %v167 = vpop.f32.mrf.mxu0
    %v168 = vadd.f32 %v38, %v167
    %v169 = vpop.f32.mrf.mxu0
    %v170 = vpop.f32.mrf.mxu0
    %v171 = vadd.f32 %v38, %v170
    %v172 = vpop.f32.mrf.mxu0
    %173 = vmatprep.mubr.bf16.mxu0 0
    %174 = vmatmul.mubr.bf16.gmra.mxu0 %v94
    %v175 = vpop.f32.mrf.mxu0
    %v176 = vadd.f32 %v38, %v175
    %v177 = vpop.f32.mrf.mxu0
    %v178 = vpop.f32.mrf.mxu0
    %v179 = vadd.f32 %v38, %v178
    %v180 = vpop.f32.mrf.mxu0
    %181 = vmatprep.mubr.bf16.mxu0 0
    %182 = vmatmul.mubr.bf16.gmra.mxu0 %v97
    %v183 = vpop.f32.mrf.mxu0
    %v184 = vadd.f32 %v38, %v183
    %v185 = vpop.f32.mrf.mxu0
    %v186 = vpop.f32.mrf.mxu0
    %v187 = vadd.f32 %v38, %v186
    %v188 = vpop.f32.mrf.mxu0
    %189 = vmatprep.mubr.bf16.mxu0 0
    %190 = vmatmul.mubr.bf16.gmra.mxu0 %v100
    %v191 = vpop.f32.mrf.mxu0
    %v192 = vadd.f32 %v38, %v191
    %v193 = vpop.f32.mrf.mxu0
    %v194 = vpop.f32.mrf.mxu0
    %v195 = vadd.f32 %v38, %v194
    %v196 = vpop.f32.mrf.mxu0
    %197 = vmatprep.mubr.bf16.mxu0 0
    %198 = vmatmul.mubr.bf16.gmra.mxu0 %v103
    %v199 = vpop.f32.mrf.mxu0
    %v200 = vadd.f32 %v38, %v199
    %v201 = vpop.f32.mrf.mxu0
    %v202 = vpop.f32.mrf.mxu0
    %v203 = vadd.f32 %v38, %v202
    %v204 = vpop.f32.mrf.mxu0
    %205 = vdwg.mxu0
    %206 = vst [vmem:[#allocation2] sm:$0xff] %v144
    %207 = vst [vmem:[#allocation2 + $0x8] sm:$0xff] %v147
    %208 = vst [vmem:[#allocation2 + $0x10] sm:$0xff] %v152
    %209 = vst [vmem:[#allocation2 + $0x18] sm:$0xff] %v155
    %210 = vst [vmem:[#allocation2 + $0x20] sm:$0xff] %v160
    %211 = vst [vmem:[#allocation2 + $0x28] sm:$0xff] %v163
    %212 = vst [vmem:[#allocation2 + $0x30] sm:$0xff] %v168
    %213 = vst [vmem:[#allocation2 + $0x38] sm:$0xff] %v171
    %214 = vst [vmem:[#allocation2 + $0x40] sm:$0xff] %v176
    %215 = vst [vmem:[#allocation2 + $0x48] sm:$0xff] %v179
    %216 = vst [vmem:[#allocation2 + $0x50] sm:$0xff] %v184
    %217 = vst [vmem:[#allocation2 + $0x58] sm:$0xff] %v187
    %218 = vst [vmem:[#allocation2 + $0x60] sm:$0xff] %v192
    %219 = vst [vmem:[#allocation2 + $0x68] sm:$0xff] %v195
    %220 = vst [vmem:[#allocation2 + $0x70] sm:$0xff] %v200
    %221 = vst [vmem:[#allocation2 + $0x78] sm:$0xff] %v203
    // Predicated region
    $region14: #{tpu_custom_call.1} parent=1 // pred_check
      _
    $region15: #{tpu_custom_call.1} parent=1 // pred_check_branch
      %223 = sbr.rel (0) target = $region17
    $region16: #{tpu_custom_call.1} parent=1 // pred_region
      %s225 = ssub.s32 2048, 2048
      %226 = vsyncadd [#allocation3], %s225
      %s227 = sshll.u32 [#allocation2], 4
      %s228 = int_to_ptr.vmem [resolvable:$true] %s227
      %233 = dma.vmem_to_hbm [thread:$0]  %s228, 2048, %s3, [#allocation3], 128, 128, 8
    $region17: #{tpu_custom_call.1} parent=1 // pred_fallthru
      _
    // Predicated region
    $region18: #{tpu_custom_call.1} parent=1 // pred_check
      _
    $region19: #{tpu_custom_call.1} parent=1 // pred_check_branch
      %235 = sbr.rel (0) target = $region21
    $region20: #{tpu_custom_call.1} parent=1 // pred_region
      %236 = dma.done [#allocation3], 2048
    $region21: #{tpu_custom_call.1} parent=1 // pred_fallthru
      _
    %237 = vsyncpa [#allocation3], 1

</llo_original>
